<compile_context>
chip_gen: v7x
topology: tpu7x:2x2x1
jax: 0.10.0
libtpu: 0.0.40
codegen_flags: <defaults>
</compile_context>

<pallas_src>
import functools

import jax
import jax.numpy as jnp
from jax.experimental import pallas as pl
from jax.experimental.pallas import tpu as pltpu

HIDDEN1 = 128
HIDDEN2 = 64


def _round_up(x, m):
    return ((x + m - 1) // m) * m


def actor_kernel(x_ref, w1_ref, b1_ref, w2_ref, b2_ref, w3_ref, b3_ref, o_ref,
                 *, use_bf16):
    """One batch tile: x(tile_b, S) -> o(tile_b, A). Weights resident in VMEM."""
    x = x_ref[...]
    if use_bf16:
        # Weights already arrive as bf16 (cast once, outside the hot path);
        # only matmul operands go bf16 — elementwise math stays f32 (v5e-safe).
        x = x.astype(jnp.bfloat16)

    # fc1 + relu (MXU, f32 accumulation)
    h1 = jnp.dot(x, w1_ref[...], preferred_element_type=jnp.float32)
    h1 = jnp.maximum(h1 + b1_ref[...], 0.0)

    # fc2 + relu
    h1m = h1.astype(jnp.bfloat16) if use_bf16 else h1
    h2 = jnp.dot(h1m, w2_ref[...], preferred_element_type=jnp.float32)
    h2 = jnp.maximum(h2 + b2_ref[...], 0.0)

    # fc3 + tanh  (64 -> action_dim; tiny MXU pass, accepted)
    h2m = h2.astype(jnp.bfloat16) if use_bf16 else h2
    h3 = jnp.dot(h2m, w3_ref[...], preferred_element_type=jnp.float32)
    o_ref[...] = jnp.tanh(h3 + b3_ref[...]).astype(o_ref.dtype)
    # TODO(synk): max_action is stored by the PyTorch module but never applied
    # in forward(); intentionally not applied here either.


def prepare_actor_params(params, *, use_bf16=True):
    """Cast weights once (hoists per-call casts out of the inference path)."""
    wt_dtype = jnp.bfloat16 if use_bf16 else jnp.float32
    out = dict(params)
    for k in ("W1", "W2", "W3"):
        if out[k].dtype != wt_dtype:
            out[k] = out[k].astype(wt_dtype)
    return out


def actor_forward(state, params, *, tile_b=4096, use_bf16=True):
    """state: (B, state_dim) f32.  params: dict of W1,b1,W2,b2,W3,b3."""
    B, state_dim = state.shape
    action_dim = params["W3"].shape[1]

    wt_dtype = jnp.bfloat16 if use_bf16 else jnp.float32
    # No-op if params were already prepared with prepare_actor_params().
    W1 = params["W1"] if params["W1"].dtype == wt_dtype else params["W1"].astype(wt_dtype)
    W2 = params["W2"] if params["W2"].dtype == wt_dtype else params["W2"].astype(wt_dtype)
    W3 = params["W3"] if params["W3"].dtype == wt_dtype else params["W3"].astype(wt_dtype)
    b1, b2, b3 = params["b1"], params["b2"], params["b3"]

    # Batch tile: multiple of 8 (sublane); never bigger than the (rounded) batch.
    tile_b = _round_up(max(8, tile_b), 8)
    tile_b = min(tile_b, _round_up(B, 8))
    # v7x: give both TensorCores grid steps for medium/large batches.
    if B >= 256:
        tile_b = min(tile_b, max(8, _round_up(-(-B // 2), 8)))

    grid = (pl.cdiv(B, tile_b),)  # ragged last block handled/masked by Pallas

    flops = 2 * B * (state_dim * HIDDEN1
                     + HIDDEN1 * HIDDEN2
                     + HIDDEN2 * action_dim)
    bytes_accessed = (
        B * state_dim * 4
        + sum(int(a.size) * a.dtype.itemsize for a in (W1, b1, W2, b2, W3, b3))
        + B * action_dim * 4)
    cost = pl.CostEstimate(flops=flops,
                           transcendentals=B * action_dim,
                           bytes_accessed=bytes_accessed)

    # Per-step VMEM estimate: double-buffered input/output tiles + f32 h1/h2
    # temporaries + resident weights.  Only set an explicit limit when the
    # tile is pushed past what v5e's 16 MiB scoped default can hold.
    vmem_est = (tile_b * (2 * state_dim * 4 + 2 * action_dim * 4
                          + (HIDDEN1 + HIDDEN2) * 4)
                + sum(int(a.size) * a.dtype.itemsize
                      for a in (W1, b1, W2, b2, W3, b3)))
    compiler_kwargs = dict(dimension_semantics=("parallel",))
    if vmem_est > 12 * 1024 * 1024:
        compiler_kwargs["vmem_limit_bytes"] = int(
            min(2 * vmem_est, 64 * 1024 * 1024))

    kernel = functools.partial(actor_kernel, use_bf16=use_bf16)

    out = pl.pallas_call(
        kernel,
        out_shape=jax.ShapeDtypeStruct((B, action_dim), jnp.float32),
        grid_spec=pltpu.PrefetchScalarGridSpec(
            num_scalar_prefetch=0,
            grid=grid,
            in_specs=[
                # streamed per-tile input
                pl.BlockSpec((tile_b, state_dim), lambda i: (i, 0)),
                # weights / biases: pinned in VMEM across all grid steps
                pl.BlockSpec((state_dim, HIDDEN1), lambda i: (0, 0)),
                pl.BlockSpec((1, HIDDEN1), lambda i: (0, 0)),
                pl.BlockSpec((HIDDEN1, HIDDEN2), lambda i: (0, 0)),
                pl.BlockSpec((1, HIDDEN2), lambda i: (0, 0)),
                pl.BlockSpec((HIDDEN2, action_dim), lambda i: (0, 0)),
                pl.BlockSpec((1, action_dim), lambda i: (0, 0)),
            ],
            out_specs=pl.BlockSpec((tile_b, action_dim), lambda i: (i, 0)),
        ),
        compiler_params=pltpu.CompilerParams(**compiler_kwargs),
        cost_estimate=cost,
    )(state, W1, b1, W2, b2, W3, b3)

    return out


def init_actor_params(key, state_dim, action_dim):
    """PyTorch-Linear-style init: U(-1/sqrt(fan_in), 1/sqrt(fan_in))."""
    def linear(k, fan_in, fan_out):
        kw, kb = jax.random.split(k)
        bound = 1.0 / jnp.sqrt(jnp.float32(fan_in))
        W = jax.random.uniform(kw, (fan_in, fan_out), jnp.float32, -bound, bound)
        b = jax.random.uniform(kb, (1, fan_out), jnp.float32, -bound, bound)
        return W, b

    k1, k2, k3 = jax.random.split(key, 3)
    W1, b1 = linear(k1, state_dim, HIDDEN1)
    W2, b2 = linear(k2, HIDDEN1, HIDDEN2)
    W3, b3 = linear(k3, HIDDEN2, action_dim)
    return {"W1": W1, "b1": b1, "W2": W2, "b2": b2, "W3": W3, "b3": b3}


def _reference(state, params):
    h = jnp.maximum(state @ params["W1"] + params["b1"], 0.0)
    h = jnp.maximum(h @ params["W2"] + params["b2"], 0.0)
    return jnp.tanh(h @ params["W3"] + params["b3"])


if __name__ == "__main__":
    key = jax.random.PRNGKey(0)
    k_params, k_state_small, k_state_big = jax.random.split(key, 3)

    state_dim, action_dim = 16, 4
    params = init_actor_params(k_params, state_dim, action_dim)
    params_bf16 = prepare_actor_params(params, use_bf16=True)

    # 1) tiny batch (single tile), default bf16-operand path — inference call.
    state_small = jax.random.normal(k_state_small, (8, state_dim), jnp.float32)
    out_small = jax.block_until_ready(actor_forward(state_small, params_bf16))
    ref_small = _reference(state_small, params)
    assert out_small.shape == (8, action_dim)
    assert jnp.allclose(out_small, ref_small, atol=2e-2), "bf16 small-batch mismatch"

    # 2) ragged multi-tile grid (B not a multiple of tile_b) — exercises batch
    #    streaming, resident weights, and masked partial-block output writes.
    state_big = jax.random.normal(k_state_big, (100, state_dim), jnp.float32)
    ref_big = _reference(state_big, params)

    out_big_bf16 = jax.block_until_ready(
        actor_forward(state_big, params_bf16, tile_b=32))
    assert out_big_bf16.shape == (100, action_dim)
    assert jnp.allclose(out_big_bf16, ref_big, atol=2e-2), "bf16 multi-tile mismatch"

    # 3) exact f32 path (use_bf16=False) for bit-level-ish verification.
    out_big_f32 = jax.block_until_ready(
        actor_forward(state_big, params, tile_b=32, use_bf16=False))
    assert jnp.allclose(out_big_f32, ref_big, atol=1e-5), "f32 multi-tile mismatch"

    print("KERNEL_OK")
</pallas_src>

<mosaic_0001>
module attributes {stable_mosaic.version = 11 : i64} {
  func.func @actor_kernel(%arg0: i32, %arg1: memref<8x16xf32, #tpu.memory_space<vmem>>, %arg2: memref<16x128xbf16, #tpu.memory_space<vmem>>, %arg3: memref<1x128xf32, #tpu.memory_space<vmem>>, %arg4: memref<128x64xbf16, #tpu.memory_space<vmem>>, %arg5: memref<1x64xf32, #tpu.memory_space<vmem>>, %arg6: memref<64x4xbf16, #tpu.memory_space<vmem>>, %arg7: memref<1x4xf32, #tpu.memory_space<vmem>>, %arg8: memref<8x4xf32, #tpu.memory_space<vmem>>) attributes {dimension_semantics = [#tpu.dimension_semantics<parallel>], iteration_bounds = array<i64: 1>, scalar_prefetch = 0 : i64, scratch_operands = 0 : i64, tpu.core_type = #tpu.core_type<tc>, window_params = [{transform_indices = @transform_0, window_bounds = array<i64: 8, 16>}, {pipeline_mode = #tpu.pipeline_mode<synchronous>, transform_indices = @transform_1, window_bounds = array<i64: 16, 128>}, {pipeline_mode = #tpu.pipeline_mode<synchronous>, transform_indices = @transform_2, window_bounds = array<i64: 1, 128>}, {pipeline_mode = #tpu.pipeline_mode<synchronous>, transform_indices = @transform_3, window_bounds = array<i64: 128, 64>}, {pipeline_mode = #tpu.pipeline_mode<synchronous>, transform_indices = @transform_4, window_bounds = array<i64: 1, 64>}, {pipeline_mode = #tpu.pipeline_mode<synchronous>, transform_indices = @transform_5, window_bounds = array<i64: 64, 4>}, {pipeline_mode = #tpu.pipeline_mode<synchronous>, transform_indices = @transform_6, window_bounds = array<i64: 1, 4>}, {transform_indices = @transform_7, window_bounds = array<i64: 8, 4>}]} {
    %c0 = arith.constant 0 : index
    %c0_0 = arith.constant 0 : index
    %0 = vector.load %arg1[%c0, %c0_0] : memref<8x16xf32, #tpu.memory_space<vmem>>, vector<8x16xf32>
    %1 = arith.truncf %0 : vector<8x16xf32> to vector<8x16xbf16>
    %c0_1 = arith.constant 0 : index
    %c0_2 = arith.constant 0 : index
    %2 = vector.load %arg2[%c0_1, %c0_2] : memref<16x128xbf16, #tpu.memory_space<vmem>>, vector<16x128xbf16>
    %cst = arith.constant dense<0.000000e+00> : vector<8x128xf32>
    %3 = tpu.matmul %1, %2, %cst {dimension_numbers = #tpu.dot_dimension_numbers<[1], [0], [0], [1], [0, 0, 1, 1], [], []>} : vector<8x16xbf16>, vector<16x128xbf16>, vector<8x128xf32> -> vector<8x128xf32>
    %c0_3 = arith.constant 0 : index
    %c0_4 = arith.constant 0 : index
    %4 = vector.load %arg3[%c0_3, %c0_4] : memref<1x128xf32, #tpu.memory_space<vmem>>, vector<1x128xf32>
    %5 = vector.broadcast %4 : vector<1x128xf32> to vector<8x128xf32>
    %6 = arith.addf %3, %5 : vector<8x128xf32>
    %cst_5 = arith.constant 0.000000e+00 : f32
    %7 = vector.broadcast %cst_5 : f32 to vector<8x128xf32>
    %8 = arith.maximumf %6, %7 : vector<8x128xf32>
    %9 = arith.truncf %8 : vector<8x128xf32> to vector<8x128xbf16>
    %c0_6 = arith.constant 0 : index
    %c0_7 = arith.constant 0 : index
    %10 = vector.load %arg4[%c0_6, %c0_7] : memref<128x64xbf16, #tpu.memory_space<vmem>>, vector<128x64xbf16>
    %cst_8 = arith.constant dense<0.000000e+00> : vector<8x64xf32>
    %11 = tpu.matmul %9, %10, %cst_8 {dimension_numbers = #tpu.dot_dimension_numbers<[1], [0], [0], [1], [0, 0, 1, 1], [], []>} : vector<8x128xbf16>, vector<128x64xbf16>, vector<8x64xf32> -> vector<8x64xf32>
    %c0_9 = arith.constant 0 : index
    %c0_10 = arith.constant 0 : index
    %12 = vector.load %arg5[%c0_9, %c0_10] : memref<1x64xf32, #tpu.memory_space<vmem>>, vector<1x64xf32>
    %13 = vector.broadcast %12 : vector<1x64xf32> to vector<8x64xf32>
    %14 = arith.addf %11, %13 : vector<8x64xf32>
    %cst_11 = arith.constant 0.000000e+00 : f32
    %15 = vector.broadcast %cst_11 : f32 to vector<8x64xf32>
    %16 = arith.maximumf %14, %15 : vector<8x64xf32>
    %17 = arith.truncf %16 : vector<8x64xf32> to vector<8x64xbf16>
    %c0_12 = arith.constant 0 : index
    %c0_13 = arith.constant 0 : index
    %18 = vector.load %arg6[%c0_12, %c0_13] : memref<64x4xbf16, #tpu.memory_space<vmem>>, vector<64x4xbf16>
    %cst_14 = arith.constant dense<0.000000e+00> : vector<8x4xf32>
    %19 = tpu.matmul %17, %18, %cst_14 {dimension_numbers = #tpu.dot_dimension_numbers<[1], [0], [0], [1], [0, 0, 1, 1], [], []>} : vector<8x64xbf16>, vector<64x4xbf16>, vector<8x4xf32> -> vector<8x4xf32>
    %c0_15 = arith.constant 0 : index
    %c0_16 = arith.constant 0 : index
    %20 = vector.load %arg7[%c0_15, %c0_16] : memref<1x4xf32, #tpu.memory_space<vmem>>, vector<1x4xf32>
    %21 = vector.broadcast %20 : vector<1x4xf32> to vector<8x4xf32>
    %22 = arith.addf %19, %21 : vector<8x4xf32>
    %23 = math.tanh %22 : vector<8x4xf32>
    %c0_17 = arith.constant 0 : index
    %c0_18 = arith.constant 0 : index
    %24 = vector.load %arg8[%c0_17, %c0_18] : memref<8x4xf32, #tpu.memory_space<vmem>>, vector<8x4xf32>
    tpu.vector_store %arg8[%c0_17, %c0_18], %23 {strides = array<i32>} : memref<8x4xf32, #tpu.memory_space<vmem>>, vector<8x4xf32>,
    return
  }
  func.func @transform_0(%arg0: i32) -> (i32, i32) {
    %c0_i32 = arith.constant 0 : i32
    %c0_i32_0 = arith.constant 0 : i32
    return %arg0, %c0_i32 : i32, i32
  }
  func.func @transform_1(%arg0: i32) -> (i32, i32) {
    %c0_i32 = arith.constant 0 : i32
    %c0_i32_0 = arith.constant 0 : i32
    %c0_i32_1 = arith.constant 0 : i32
    return %c0_i32, %c0_i32_0 : i32, i32
  }
  func.func @transform_2(%arg0: i32) -> (i32, i32) {
    %c0_i32 = arith.constant 0 : i32
    %c0_i32_0 = arith.constant 0 : i32
    %c0_i32_1 = arith.constant 0 : i32
    return %c0_i32, %c0_i32_0 : i32, i32
  }
  func.func @transform_3(%arg0: i32) -> (i32, i32) {
    %c0_i32 = arith.constant 0 : i32
    %c0_i32_0 = arith.constant 0 : i32
    %c0_i32_1 = arith.constant 0 : i32
    return %c0_i32, %c0_i32_0 : i32, i32
  }
  func.func @transform_4(%arg0: i32) -> (i32, i32) {
    %c0_i32 = arith.constant 0 : i32
    %c0_i32_0 = arith.constant 0 : i32
    %c0_i32_1 = arith.constant 0 : i32
    return %c0_i32, %c0_i32_0 : i32, i32
  }
  func.func @transform_5(%arg0: i32) -> (i32, i32) {
    %c0_i32 = arith.constant 0 : i32
    %c0_i32_0 = arith.constant 0 : i32
    %c0_i32_1 = arith.constant 0 : i32
    return %c0_i32, %c0_i32_0 : i32, i32
  }
  func.func @transform_6(%arg0: i32) -> (i32, i32) {
    %c0_i32 = arith.constant 0 : i32
    %c0_i32_0 = arith.constant 0 : i32
    %c0_i32_1 = arith.constant 0 : i32
    return %c0_i32, %c0_i32_0 : i32, i32
  }
  func.func @transform_7(%arg0: i32) -> (i32, i32) {
    %c0_i32 = arith.constant 0 : i32
    %c0_i32_0 = arith.constant 0 : i32
    return %arg0, %c0_i32 : i32, i32
  }
}

</mosaic_0001>

<llo_original>
// kernel: tpu_custom_call.1
$region0: #{tpu_custom_call.1}
  #allocation0 [shape = 'u32[]', space=smem, size = 0x4, offset = 0x4, fixed_abs, tag = 'smem constant byte address 0x4 - core index']
  #allocation1 [shape = 'u32[144,128]{1,0:T(1,128)}', space=vmem, size = 0x12000, scoped, tag = 'internal scratch']
  %s0 = inlined_call_operand.vmem [shape: f32[8,16], index: 0, kind: input, shape index: {}]
  %s1 = inlined_call_operand.vmem [shape: bf16[16,128], index: 1, kind: input, shape index: {}]
  %s2 = inlined_call_operand.vmem [shape: f32[1,128], index: 2, kind: input, shape index: {}]
  %s3 = inlined_call_operand.vmem [shape: bf16[128,64], index: 3, kind: input, shape index: {}]
  %s4 = inlined_call_operand.vmem [shape: f32[1,64], index: 4, kind: input, shape index: {}]
  %s5 = inlined_call_operand.vmem [shape: bf16[64,4], index: 5, kind: input, shape index: {}]
  %s6 = inlined_call_operand.vmem [shape: f32[1,4], index: 6, kind: input, shape index: {}]
  %s7 = inlined_call_operand.vmem [shape: f32[8,4], index: 7, kind: output, shape index: {}]
  %s8 = sld [smem:[#allocation0]]
  $region38: #{tpu_custom_call.1} parent=0
    _
  %s10 = ssub.s32 1, %s8
  %s11 = scalar_select 0, %s10, %s8
  // Predicated region
  $region2: #{tpu_custom_call.1} parent=0 // pred_check
    _
  $region3: #{tpu_custom_call.1} parent=0 // pred_check_branch
    %13 = sbr.rel (0) target = $region5
  $region4: #{tpu_custom_call.1} parent=0 // pred_region
    _
  $region5: #{tpu_custom_call.1} parent=0 // pred_fallthru
    _
  // Predicated region
  $region6: #{tpu_custom_call.1} parent=0 // pred_check
    _
  $region7: #{tpu_custom_call.1} parent=0 // pred_check_branch
    %15 = sbr.rel (0) target = $region9
  $region8: #{tpu_custom_call.1} parent=0 // pred_region
    _
  $region9: #{tpu_custom_call.1} parent=0 // pred_fallthru
    _
  // Predicated region
  $region10: #{tpu_custom_call.1} parent=0 // pred_check
    _
  $region11: #{tpu_custom_call.1} parent=0 // pred_check_branch
    %17 = sbr.rel (0) target = $region13
  $region12: #{tpu_custom_call.1} parent=0 // pred_region
    _
  $region13: #{tpu_custom_call.1} parent=0 // pred_fallthru
    _
  // Predicated region
  $region14: #{tpu_custom_call.1} parent=0 // pred_check
    _
  $region15: #{tpu_custom_call.1} parent=0 // pred_check_branch
    %19 = sbr.rel (0) target = $region17
  $region16: #{tpu_custom_call.1} parent=0 // pred_region
    _
  $region17: #{tpu_custom_call.1} parent=0 // pred_fallthru
    _
  // Predicated region
  $region18: #{tpu_custom_call.1} parent=0 // pred_check
    _
  $region19: #{tpu_custom_call.1} parent=0 // pred_check_branch
    %21 = sbr.rel (0) target = $region21
  $region20: #{tpu_custom_call.1} parent=0 // pred_region
    _
  $region21: #{tpu_custom_call.1} parent=0 // pred_fallthru
    _
  // Predicated region
  $region22: #{tpu_custom_call.1} parent=0 // pred_check
    _
  $region23: #{tpu_custom_call.1} parent=0 // pred_check_branch
    %23 = sbr.rel (0) target = $region25
  $region24: #{tpu_custom_call.1} parent=0 // pred_region
    _
  $region25: #{tpu_custom_call.1} parent=0 // pred_fallthru
    _
  // Predicated region
  $region26: #{tpu_custom_call.1} parent=0 // pred_check
    _
  $region27: #{tpu_custom_call.1} parent=0 // pred_check_branch
    %25 = sbr.rel (0) target = $region29
  $region28: #{tpu_custom_call.1} parent=0 // pred_region
    _
  $region29: #{tpu_custom_call.1} parent=0 // pred_fallthru
    _
  %v27 = vld [vmem:[%s0] sm:$0xff]
  %v28 = vpack.c.bf16 %v27, %v27
  %v29 = vld [vmem:[%s1] sm:$0xf]
  %v30 = vld [vmem:[%s1 + $0x4] sm:$0xf]
  %v31 = vld [vmem:[%s2] sm:$0x1]
  %v33 = vlaneseq
  %v34 = vshrl.u32 %v33, 7
  %v35 = vsub.s32 0, %v34
  %v36 = vrot.slane %v31, %v35
  %v40 = vunpack.c.l.b16 %v29
  %v41 = vunpack.c.l.b16 %v30
  %v42 = vpack.c.b16 %v41, %v40
  %vm44 = vcmask 130048
  %v46 = vsel %vm44, %v28, 0
  %48 = vmatprep.subr.bf16.mxu0 0
  %49 = vmatpush1.bf16.msra.mxu0 %v42
  %50 = vmatprep.subr.bf16.mxu0 0
  %51 = vmatpush1.bf16.msra.mxu0 0
  %52 = vmatprep.subr.bf16.mxu0 0
  %53 = vmatpush1.bf16.msra.mxu0 0
  %54 = vmatprep.subr.bf16.mxu0 0
  %55 = vmatpush1.bf16.msra.mxu0 0
  %56 = vmatprep.subr.bf16.mxu0 0
  %57 = vmatpush1.bf16.msra.mxu0 0
  %58 = vmatprep.subr.bf16.mxu0 0
  %59 = vmatpush1.bf16.msra.mxu0 0
  %60 = vmatprep.subr.bf16.mxu0 0
  %61 = vmatpush1.bf16.msra.mxu0 0
  %62 = vmatprep.subr.bf16.mxu0 0
  %63 = vmatpush1.bf16.msra.mxu0 0
  %64 = vmatprep.subr.bf16.mxu0 0
  %65 = vmatpush1.bf16.msra.mxu0 0
  %66 = vmatprep.subr.bf16.mxu0 0
  %67 = vmatpush1.bf16.msra.mxu0 0
  %68 = vmatprep.subr.bf16.mxu0 0
  %69 = vmatpush1.bf16.msra.mxu0 0
  %70 = vmatprep.subr.bf16.mxu0 0
  %71 = vmatpush1.bf16.msra.mxu0 0
  %72 = vmatprep.subr.bf16.mxu0 0
  %73 = vmatpush1.bf16.msra.mxu0 0
  %74 = vmatprep.subr.bf16.mxu0 0
  %75 = vmatpush1.bf16.msra.mxu0 0
  %76 = vmatprep.subr.bf16.mxu0 0
  %77 = vmatpush1.bf16.msra.mxu0 0
  %78 = vmatprep.subr.bf16.mxu0 0
  %79 = vmatpush1.bf16.msra.mxu0 0
  %80 = vmatprep.mubr.bf16.mxu0 0
  %81 = vmatmul.mubr.bf16.gmra.mrb[0].mxu0 %v46
  %v82 = vpop.f32.mrb[0].mxu0
  %v83 = vadd.f32 %v36, %v82
  %v84 = vpop.f32.mrb[0].mxu0
  %v85 = vpop.f32.mrb[0].mxu0
  %v86 = vpop.f32.mrb[0].mxu0
  %87 = vdwg.mxu0
  %v88 = vmax.f32 %v83, 0.0
  %v89 = vpack.c.bf16 %v88, %v88
  %v90 = vld [vmem:[%s3] sm:$0xf]
  %v91 = vld [vmem:[%s3 + $0x4] sm:$0xf]
  %v92 = vld [vmem:[%s3 + $0x8] sm:$0xf]
  %v93 = vld [vmem:[%s3 + $0xc] sm:$0xf]
  %v94 = vld [vmem:[%s3 + $0x10] sm:$0xf]
  %v95 = vld [vmem:[%s3 + $0x14] sm:$0xf]
  %v96 = vld [vmem:[%s3 + $0x18] sm:$0xf]
  %v97 = vld [vmem:[%s3 + $0x1c] sm:$0xf]
  %v98 = vld [vmem:[%s3 + $0x20] sm:$0xf]
  %v99 = vld [vmem:[%s3 + $0x24] sm:$0xf]
  %v100 = vld [vmem:[%s3 + $0x28] sm:$0xf]
  %v101 = vld [vmem:[%s3 + $0x2c] sm:$0xf]
  %v102 = vld [vmem:[%s3 + $0x30] sm:$0xf]
  %v103 = vld [vmem:[%s3 + $0x34] sm:$0xf]
  %v104 = vld [vmem:[%s3 + $0x38] sm:$0xf]
  %v105 = vld [vmem:[%s3 + $0x3c] sm:$0xf]
  %v106 = vld [vmem:[%s4] sm:$0x1]
  %v108 = vlaneseq
  %v109 = vshrl.u32 %v108, 7
  %v110 = vsub.s32 0, %v109
  %v111 = vrot.slane %v106, %v110
  %v129 = vunpack.c.l.b16 %v90
  %v130 = vunpack.c.l.b16 %v91
  %v131 = vunpack.c.l.b16 %v92
  %v132 = vunpack.c.l.b16 %v93
  %v133 = vunpack.c.l.b16 %v94
  %v134 = vunpack.c.l.b16 %v95
  %v135 = vunpack.c.l.b16 %v96
  %v136 = vunpack.c.l.b16 %v97
  %v137 = vunpack.c.l.b16 %v98
  %v138 = vunpack.c.l.b16 %v99
  %v139 = vunpack.c.l.b16 %v100
  %v140 = vunpack.c.l.b16 %v101
  %v141 = vunpack.c.l.b16 %v102
  %v142 = vunpack.c.l.b16 %v103
  %v143 = vunpack.c.l.b16 %v104
  %v144 = vunpack.c.l.b16 %v105
  %v145 = vpack.c.b16 %v130, %v129
  %v146 = vpack.c.b16 %v132, %v131
  %v147 = vpack.c.b16 %v134, %v133
  %v148 = vpack.c.b16 %v136, %v135
  %v149 = vpack.c.b16 %v138, %v137
  %v150 = vpack.c.b16 %v140, %v139
  %v151 = vpack.c.b16 %v142, %v141
  %v152 = vpack.c.b16 %v144, %v143
  %161 = vmatprep.subr.bf16.mxu0 0
  %162 = vmatpush1.bf16.msra.mxu0 %v145
  %163 = vmatprep.subr.bf16.mxu0 0
  %164 = vmatpush1.bf16.msra.mxu0 %v146
  %165 = vmatprep.subr.bf16.mxu0 0
  %166 = vmatpush1.bf16.msra.mxu0 %v147
  %167 = vmatprep.subr.bf16.mxu0 0
  %168 = vmatpush1.bf16.msra.mxu0 %v148
  %169 = vmatprep.subr.bf16.mxu0 0
  %170 = vmatpush1.bf16.msra.mxu0 %v149
  %171 = vmatprep.subr.bf16.mxu0 0
  %172 = vmatpush1.bf16.msra.mxu0 %v150
  %173 = vmatprep.subr.bf16.mxu0 0
  %174 = vmatpush1.bf16.msra.mxu0 %v151
  %175 = vmatprep.subr.bf16.mxu0 0
  %176 = vmatpush1.bf16.msra.mxu0 %v152
  %177 = vmatprep.subr.bf16.mxu0 0
  %178 = vmatpush1.bf16.msra.mxu0 0
  %179 = vmatprep.subr.bf16.mxu0 0
  %180 = vmatpush1.bf16.msra.mxu0 0
  %181 = vmatprep.subr.bf16.mxu0 0
  %182 = vmatpush1.bf16.msra.mxu0 0
  %183 = vmatprep.subr.bf16.mxu0 0
  %184 = vmatpush1.bf16.msra.mxu0 0
  %185 = vmatprep.subr.bf16.mxu0 0
  %186 = vmatpush1.bf16.msra.mxu0 0
  %187 = vmatprep.subr.bf16.mxu0 0
  %188 = vmatpush1.bf16.msra.mxu0 0
  %189 = vmatprep.subr.bf16.mxu0 0
  %190 = vmatpush1.bf16.msra.mxu0 0
  %191 = vmatprep.subr.bf16.mxu0 0
  %192 = vmatpush1.bf16.msra.mxu0 0
  %193 = vmatprep.mubr.bf16.mxu0 0
  %194 = vmatmul.mubr.bf16.gmra.mrb[0].mxu0 %v89
  %v195 = vpop.f32.mrb[0].mxu0
  %v196 = vadd.f32 %v111, %v195
  %v197 = vpop.f32.mrb[0].mxu0
  %v198 = vpop.f32.mrb[0].mxu0
  %v199 = vpop.f32.mrb[0].mxu0
  %200 = vdwg.mxu0
  %v201 = vmax.f32 %v196, 0.0
  %v202 = vpack.c.bf16 %v201, %v201
  %v203 = vld [vmem:[%s5] sm:$0xf]
  %v204 = vld [vmem:[%s5 + $0x4] sm:$0xf]
  %v205 = vld [vmem:[%s5 + $0x8] sm:$0xf]
  %v206 = vld [vmem:[%s5 + $0xc] sm:$0xf]
  %v207 = vld [vmem:[%s5 + $0x10] sm:$0xf]
  %v208 = vld [vmem:[%s5 + $0x14] sm:$0xf]
  %v209 = vld [vmem:[%s5 + $0x18] sm:$0xf]
  %v210 = vld [vmem:[%s5 + $0x1c] sm:$0xf]
  %v211 = vld [vmem:[%s6] sm:$0x1]
  %v213 = vlaneseq
  %v214 = vshrl.u32 %v213, 7
  %v215 = vsub.s32 0, %v214
  %v216 = vrot.slane %v211, %v215
  %v226 = vunpack.c.l.b16 %v203
  %v227 = vunpack.c.l.b16 %v204
  %v228 = vunpack.c.l.b16 %v205
  %v229 = vunpack.c.l.b16 %v206
  %v230 = vunpack.c.l.b16 %v207
  %v231 = vunpack.c.l.b16 %v208
  %v232 = vunpack.c.l.b16 %v209
  %v233 = vunpack.c.l.b16 %v210
  %v234 = vpack.c.b16 %v227, %v226
  %v235 = vpack.c.b16 %v229, %v228
  %v236 = vpack.c.b16 %v231, %v230
  %v237 = vpack.c.b16 %v233, %v232
  %vm242 = vcmask 523264
  %v244 = vsel %vm242, %v202, 0
  %246 = vmatprep.subr.bf16.mxu0 0
  %247 = vmatpush1.bf16.msra.mxu0 %v234
  %248 = vmatprep.subr.bf16.mxu0 0
  %249 = vmatpush1.bf16.msra.mxu0 %v235
  %250 = vmatprep.subr.bf16.mxu0 0
  %251 = vmatpush1.bf16.msra.mxu0 %v236
  %252 = vmatprep.subr.bf16.mxu0 0
  %253 = vmatpush1.bf16.msra.mxu0 %v237
  %254 = vmatprep.subr.bf16.mxu0 0
  %255 = vmatpush1.bf16.msra.mxu0 0
  %256 = vmatprep.subr.bf16.mxu0 0
  %257 = vmatpush1.bf16.msra.mxu0 0
  %258 = vmatprep.subr.bf16.mxu0 0
  %259 = vmatpush1.bf16.msra.mxu0 0
  %260 = vmatprep.subr.bf16.mxu0 0
  %261 = vmatpush1.bf16.msra.mxu0 0
  %262 = vmatprep.subr.bf16.mxu0 0
  %263 = vmatpush1.bf16.msra.mxu0 0
  %264 = vmatprep.subr.bf16.mxu0 0
  %265 = vmatpush1.bf16.msra.mxu0 0
  %266 = vmatprep.subr.bf16.mxu0 0
  %267 = vmatpush1.bf16.msra.mxu0 0
  %268 = vmatprep.subr.bf16.mxu0 0
  %269 = vmatpush1.bf16.msra.mxu0 0
  %270 = vmatprep.subr.bf16.mxu0 0
  %271 = vmatpush1.bf16.msra.mxu0 0
  %272 = vmatprep.subr.bf16.mxu0 0
  %273 = vmatpush1.bf16.msra.mxu0 0
  %274 = vmatprep.subr.bf16.mxu0 0
  %275 = vmatpush1.bf16.msra.mxu0 0
  %276 = vmatprep.subr.bf16.mxu0 0
  %277 = vmatpush1.bf16.msra.mxu0 0
  %278 = vmatprep.mubr.bf16.mxu0 0
  %279 = vmatmul.mubr.bf16.gmra.mrb[0].mxu0 %v244
  %v280 = vpop.f32.mrb[0].mxu0
  %v281 = vadd.f32 %v216, %v280
  %v282 = vpop.f32.mrb[0].mxu0
  %v283 = vpop.f32.mrb[0].mxu0
  %v284 = vpop.f32.mrb[0].mxu0
  %285 = vdwg.mxu0
  %v286 = vtanh.pop %v281
  %vm287 = vcmask 31744
  %288 = vst.msk [vmem:[%s7] sm:$0xff] %vm287, %v286
  // Predicated region
  $region30: #{tpu_custom_call.1} parent=0 // pred_check
    _
  $region31: #{tpu_custom_call.1} parent=0 // pred_check_branch
    %290 = sbr.rel (0) target = $region33
  $region32: #{tpu_custom_call.1} parent=0 // pred_region
    _
  $region33: #{tpu_custom_call.1} parent=0 // pred_fallthru
    _
  // Predicated region
  $region34: #{tpu_custom_call.1} parent=0 // pred_check
    _
  $region35: #{tpu_custom_call.1} parent=0 // pred_check_branch
    %292 = sbr.rel (0) target = $region37
  $region36: #{tpu_custom_call.1} parent=0 // pred_region
    _
  $region37: #{tpu_custom_call.1} parent=0 // pred_fallthru
    _

</llo_original>
